<compile_context>
chip_gen: v7x
topology: tpu7x:2x2x1
jax: 0.10.0
libtpu: 0.0.40
codegen_flags: <defaults>
</compile_context>

<pallas_src>
import functools

import jax
import jax.numpy as jnp
from jax.experimental import pallas as pl
from jax.experimental.pallas import tpu as pltpu


def _round_up(x, m):
    return ((x + m - 1) // m) * m


def _pick_tile(total, cap, min_parts=1):
    """Largest multiple-of-128 divisor of `total` <= cap, preferring >= min_parts blocks."""
    best = 128
    t = 128
    while t <= min(total, cap):
        if total % t == 0 and total // t >= min_parts:
            best = t
        t += 128
    return best


def _chip_caps():
    """Per-generation tiling / VMEM caps (v5e,v6e: 128 MiB VMEM; v7x: 64 MiB / TC)."""
    vmem_cap = 64 << 20  # conservative default == v7x per-TensorCore VMEM
    try:
        info = pltpu.get_tpu_info()
        cap = getattr(info, "vmem_capacity_bytes", None)
        if cap:
            vmem_cap = int(cap)
    except Exception:
        pass
    if vmem_cap >= (96 << 20):  # v5e / v6e (128 MiB)
        return dict(tm_cap=512, tk_cap=1024, tn_cap=512, vmem_limit=96 << 20)
    return dict(tm_cap=256, tk_cap=512, tn_cap=512, vmem_limit=48 << 20)


def _mosaic_params(vmem_limit, dim_semantics, flops, bytes_accessed):
    return dict(
        compiler_params=pltpu.CompilerParams(
            dimension_semantics=dim_semantics,
            vmem_limit_bytes=int(vmem_limit),
        ),
        cost_estimate=pl.CostEstimate(
            flops=int(flops), transcendentals=0, bytes_accessed=int(bytes_accessed)),
    )


# ---------------------------------------------------------------------------
# Kernel 1: out[rows, cols] = act( sum_b sum_k A[b, rows, k] @ M[b, k, cols] + bias )
# bf16 MXU inputs, f32 VMEM scratch accumulator, cast to output dtype on last step.
def _aw_acc_kernel(a_ref, w_ref, bias_ref, o_ref, acc_ref, *, apply_relu):
    b = pl.program_id(2)
    k = pl.program_id(3)

    @pl.when((b == 0) & (k == 0))
    def _():
        acc_ref[...] = jnp.zeros_like(acc_ref)

    acc_ref[...] += jnp.dot(a_ref[0], w_ref[0], preferred_element_type=jnp.float32)

    @pl.when((b == pl.num_programs(2) - 1) & (k == pl.num_programs(3) - 1))
    def _():
        out = acc_ref[...] + bias_ref[...]
        if apply_relu:
            out = jnp.maximum(out, 0.0)
        o_ref[...] = out.astype(o_ref.dtype)


def rgcn_aw_layer(A_comb, W, bias, *, apply_relu, out_dtype):
    """act( sum_b A_comb[b] @ W[b] + bias ).

    A_comb: (B, Nm, Nm) bf16, W: (B, Nm, Dout_p) bf16, bias: (1, Dout_p) f32.
    All dims 128-padded; padding MUST be zeros (padded rows/cols are then inert).
    """
    caps = _chip_caps()
    B, Nm, _ = A_comb.shape
    dout_p = W.shape[2]
    tm = _pick_tile(Nm, caps["tm_cap"], min_parts=2)  # >=2 row tiles keeps both v7x TCs busy
    tk = _pick_tile(Nm, caps["tk_cap"])               # contraction (source-node) axis, innermost
    tn = _pick_tile(dout_p, caps["tn_cap"])
    n_row, n_col, n_k = Nm // tm, dout_p // tn, Nm // tk

    flops = 2 * B * Nm * Nm * dout_p
    bytes_accessed = (A_comb.dtype.itemsize * n_col * B * Nm * Nm
                      + W.dtype.itemsize * n_row * B * Nm * dout_p
                      + 4 * dout_p
                      + jnp.dtype(out_dtype).itemsize * Nm * dout_p)

    kernel = functools.partial(_aw_acc_kernel, apply_relu=apply_relu)
    return pl.pallas_call(
        kernel,
        out_shape=jax.ShapeDtypeStruct((Nm, dout_p), out_dtype),
        grid_spec=pltpu.PrefetchScalarGridSpec(
            num_scalar_prefetch=0,
            grid=(n_row, n_col, B, n_k),
            in_specs=[
                pl.BlockSpec((1, tm, tk), lambda i, j, b, k: (b, i, k)),   # A_b tile
                pl.BlockSpec((1, tk, tn), lambda i, j, b, k: (b, k, j)),   # W_b tile
                pl.BlockSpec((1, tn), lambda i, j, b, k: (0, j)),          # bias (f32)
            ],
            out_specs=pl.BlockSpec((tm, tn), lambda i, j, b, k: (i, j)),   # resident output
            scratch_shapes=[pltpu.VMEM((tm, tn), jnp.float32)],            # f32 accumulator
        ),
        **_mosaic_params(caps["vmem_limit"],
                         ("parallel", "parallel", "arbitrary", "arbitrary"),
                         flops, bytes_accessed),
    )(A_comb, W, bias)


# ---------------------------------------------------------------------------
# Kernel 2: XW[b, rows, cols] = X[rows, :] @ W[b, :, cols]
# Precomputes the per-basis feature transform once (no per-row-tile recompute).
def _xw_kernel(x_ref, w_ref, o_ref, acc_ref):
    k = pl.program_id(3)

    @pl.when(k == 0)
    def _():
        acc_ref[...] = jnp.zeros_like(acc_ref)

    acc_ref[...] += jnp.dot(x_ref[...], w_ref[0], preferred_element_type=jnp.float32)

    @pl.when(k == pl.num_programs(3) - 1)
    def _():
        o_ref[0] = acc_ref[...].astype(o_ref.dtype)


def rgcn_xw(X, W, *, out_dtype):
    """XW[b] = X @ W[b].  X: (Nm, Din_p) bf16, W: (B, Din_p, Dout_p) bf16."""
    caps = _chip_caps()
    Nm, din_p = X.shape
    B, _, dout_p = W.shape
    tm = _pick_tile(Nm, caps["tm_cap"], min_parts=2)
    tk = _pick_tile(din_p, caps["tk_cap"])
    tn = _pick_tile(dout_p, caps["tn_cap"])
    n_row, n_col, n_k = Nm // tm, dout_p // tn, din_p // tk

    flops = 2 * B * Nm * din_p * dout_p
    bytes_accessed = (X.dtype.itemsize * n_col * B * Nm * din_p
                      + W.dtype.itemsize * n_row * B * din_p * dout_p
                      + jnp.dtype(out_dtype).itemsize * B * Nm * dout_p)

    return pl.pallas_call(
        _xw_kernel,
        out_shape=jax.ShapeDtypeStruct((B, Nm, dout_p), out_dtype),
        grid_spec=pltpu.PrefetchScalarGridSpec(
            num_scalar_prefetch=0,
            grid=(n_row, n_col, B, n_k),
            in_specs=[
                pl.BlockSpec((tm, tk), lambda i, j, b, k: (i, k)),          # X tile
                pl.BlockSpec((1, tk, tn), lambda i, j, b, k: (b, k, j)),    # W_b tile
            ],
            out_specs=pl.BlockSpec((1, tm, tn), lambda i, j, b, k: (b, i, j)),
            scratch_shapes=[pltpu.VMEM((tm, tn), jnp.float32)],             # f32 accumulator
        ),
        **_mosaic_params(caps["vmem_limit"],
                         ("parallel", "parallel", "parallel", "arbitrary"),
                         flops, bytes_accessed),
    )(X, W)


# ---------------------------------------------------------------------------
def _xavier_uniform(key, shape):
    fan_in, fan_out = shape[-2], shape[-1]
    limit = (6.0 / (fan_in + fan_out)) ** 0.5
    return jax.random.uniform(key, shape, jnp.float32, -limit, limit)


def make_rgcn_params(key, num_relations, num_bases, num_nodes, hidden, out_dim):
    """Deterministic parameter init mirroring GraphConvolution(__init__) shapes."""
    keys = jax.random.split(key, 6)
    # layer 0: featureless -> indim == num_nodes
    bases0 = _xavier_uniform(keys[0], (num_bases, num_nodes, hidden))
    comp0 = _xavier_uniform(keys[1], (num_relations, num_bases))
    b0 = jnp.zeros((1, hidden), jnp.float32)
    # layer 1: indim == hidden
    bases1 = _xavier_uniform(keys[2], (num_bases, hidden, out_dim))
    comp1 = _xavier_uniform(keys[3], (num_relations, num_bases))
    b1 = jnp.zeros((1, out_dim), jnp.float32)
    return dict(bases0=bases0, comp0=comp0, b0=b0,
                bases1=bases1, comp1=comp1, b1=b1)


def rgcn_forward(params, A):
    """Full-batch RGCN forward (2 layers, featureless input layer, ReLU, p_dropout=0)."""
    R, N, _ = A.shape
    h1 = params["bases0"].shape[2]
    h2 = params["bases1"].shape[2]

    n_p = _round_up(N, 128)
    h1_p = _round_up(h1, 128)
    h2_p = _round_up(h2, 128)
    bf16 = jnp.bfloat16

    # Fold the basis decomposition into the relational reduction (glue JAX):
    #   sum_r A_r (X W_r) = sum_b (sum_r comp[r,b] A_r) (X bases_b)
    # Pad A ONCE so the einsum emits already-padded, already-bf16 combined
    # adjacencies (no separate pad round trip on the dominant operand).
    # NOTE: all padding below is zeros; the kernels rely on that.
    A_pad = jnp.pad(A, ((0, 0), (0, n_p - N), (0, n_p - N)))
    Ab0 = jnp.einsum("rb,rnm->bnm", params["comp0"], A_pad).astype(bf16)
    Ab1 = jnp.einsum("rb,rnm->bnm", params["comp1"], A_pad).astype(bf16)

    # Zero-pad weights / biases so all lane dims are 128-multiples (lane-dense
    # stores, full MXU tiles). bf16 MXU inputs; biases stay f32.
    W0 = jnp.pad(params["bases0"], ((0, 0), (0, n_p - N), (0, h1_p - h1))).astype(bf16)
    W1 = jnp.pad(params["bases1"], ((0, 0), (0, h1_p - h1), (0, h2_p - h2))).astype(bf16)
    b0 = jnp.pad(params["b0"], ((0, 0), (0, h1_p - h1)))
    b1 = jnp.pad(params["b1"], ((0, 0), (0, h2_p - h2)))

    # layer 0: featureless == identity node features, so X @ W_b == W_b (no matmul).
    H1 = rgcn_aw_layer(Ab0, W0, b0, apply_relu=True, out_dtype=bf16)      # (n_p, h1_p)
    # TODO(synk): dropout on node rows skipped (p_dropout=0.0 in this config).
    # layer 1: precompute XW_b = H1 @ W1_b once, then sum_b A_b @ XW_b (no activation).
    XW = rgcn_xw(H1, W1, out_dtype=bf16)                                  # (B, n_p, h2_p)
    H2 = rgcn_aw_layer(Ab1, XW, b1, apply_relu=False, out_dtype=jnp.float32)
    return H2[:N, :h2]


# ---------------------------------------------------------------------------
def rgcn_reference(params, A):
    """Pure-f32 JAX reference (structural check)."""
    W0 = jnp.einsum("rb,bio->rio", params["comp0"], params["bases0"])
    W1 = jnp.einsum("rb,bio->rio", params["comp1"], params["bases1"])
    H1 = jnp.maximum(jnp.einsum("rnm,rmo->no", A, W0) + params["b0"], 0.0)
    XW1 = jnp.einsum("nd,rdo->rno", H1, W1)
    return jnp.einsum("rnm,rmo->no", A, XW1) + params["b1"]


def rgcn_reference_bf16(params, A):
    """JAX reference mirroring the kernel's precision path (bf16 inputs, f32 accumulation)."""
    bf16 = jnp.bfloat16
    Ab0 = jnp.einsum("rb,rnm->bnm", params["comp0"], A).astype(bf16)
    Ab1 = jnp.einsum("rb,rnm->bnm", params["comp1"], A).astype(bf16)
    W0 = params["bases0"].astype(bf16)
    W1 = params["bases1"].astype(bf16)
    H1 = jnp.einsum("bnm,bmo->no", Ab0, W0, preferred_element_type=jnp.float32) + params["b0"]
    H1 = jnp.maximum(H1, 0.0).astype(bf16)
    XW = jnp.einsum("nd,bdo->bno", H1, W1, preferred_element_type=jnp.float32).astype(bf16)
    return jnp.einsum("bnm,bmo->no", Ab1, XW, preferred_element_type=jnp.float32) + params["b1"]


if __name__ == "__main__":
    key = jax.random.PRNGKey(0)
    k_a, k_p = jax.random.split(key)

    num_relations = 3
    num_nodes = 64
    num_bases = 2
    hidden = 32
    out_dim = 16

    # deterministic synthetic per-relation adjacency (dense, row-normalized-ish)
    A = jax.random.bernoulli(k_a, 0.1, (num_relations, num_nodes, num_nodes))
    A = A.astype(jnp.float32)
    A = A / jnp.maximum(A.sum(axis=-1, keepdims=True), 1.0)

    params = make_rgcn_params(k_p, num_relations, num_bases, num_nodes, hidden, out_dim)

    out = jax.block_until_ready(rgcn_forward(params, A))
    assert out.shape == (num_nodes, out_dim)

    # Tight check against a reference that follows the identical bf16/f32 path.
    ref_same_prec = rgcn_reference_bf16(params, A)
    assert jnp.allclose(out, ref_same_prec, atol=2e-3, rtol=2e-3), \
        "mismatch vs same-precision JAX reference"
    # Looser structural check against the full-f32 reference (bf16 quantization noise).
    ref_f32 = rgcn_reference(params, A)
    assert jnp.allclose(out, ref_f32, atol=5e-2, rtol=5e-2), "mismatch vs f32 JAX reference"

    print("KERNEL_OK")
</pallas_src>

<mosaic_0001>
module attributes {stable_mosaic.version = 11 : i64} {
  func.func @_aw_acc_kernel(%arg0: i32, %arg1: i32, %arg2: i32, %arg3: i32, %arg4: memref<1x128x128xbf16, #tpu.memory_space<vmem>>, %arg5: memref<1x128x128xbf16, #tpu.memory_space<vmem>>, %arg6: memref<1x128xf32, #tpu.memory_space<vmem>>, %arg7: memref<128x128xbf16, #tpu.memory_space<vmem>>, %arg8: memref<128x128xf32, #tpu.memory_space<vmem>>) attributes {dimension_semantics = [#tpu.dimension_semantics<parallel>, #tpu.dimension_semantics<parallel>, #tpu.dimension_semantics<arbitrary>, #tpu.dimension_semantics<arbitrary>], iteration_bounds = array<i64: 1, 1, 2, 1>, scalar_prefetch = 0 : i64, scratch_operands = 1 : i64, tpu.core_type = #tpu.core_type<tc>, window_params = [{transform_indices = @transform_0, window_bounds = array<i64: 1, 128, 128>}, {transform_indices = @transform_1, window_bounds = array<i64: 1, 128, 128>}, {transform_indices = @transform_2, window_bounds = array<i64: 1, 128>}, {transform_indices = @transform_3, window_bounds = array<i64: 128, 128>}]} {
    %c0_i32 = arith.constant 0 : i32
    %0 = arith.cmpi eq, %arg2, %c0_i32 : i32
    %c0_i32_0 = arith.constant 0 : i32
    %1 = arith.cmpi eq, %arg3, %c0_i32_0 : i32
    %2 = arith.andi %0, %1 : i1
    %3 = arith.extui %2 : i1 to i32
    %c0_i32_1 = arith.constant 0 : i32
    %4 = arith.cmpi ne, %3, %c0_i32_1 : i32
    scf.if %4 {
      %cst_13 = arith.constant 0.000000e+00 : f32
      %18 = vector.broadcast %cst_13 : f32 to vector<128x128xf32>
      %c0_14 = arith.constant 0 : index
      %c0_15 = arith.constant 0 : index
      %19 = vector.load %arg8[%c0_14, %c0_15] : memref<128x128xf32, #tpu.memory_space<vmem>>, vector<128x128xf32>
      tpu.vector_store %arg8[%c0_14, %c0_15], %18 {strides = array<i32>} : memref<128x128xf32, #tpu.memory_space<vmem>>, vector<128x128xf32>,
    } else {
    }
    %c0 = arith.constant 0 : index
    %c0_2 = arith.constant 0 : index
    %5 = vector.load %arg8[%c0, %c0_2] : memref<128x128xf32, #tpu.memory_space<vmem>>, vector<128x128xf32>
    %c0_3 = arith.constant 0 : index
    %c0_4 = arith.constant 0 : index
    %c0_5 = arith.constant 0 : index
    %6 = vector.load %arg4[%c0_3, %c0_4, %c0_5] : memref<1x128x128xbf16, #tpu.memory_space<vmem>>, vector<1x128x128xbf16>
    %7 = vector.shape_cast %6 : vector<1x128x128xbf16> to vector<128x128xbf16>
    %c0_6 = arith.constant 0 : index
    %c0_7 = arith.constant 0 : index
    %c0_8 = arith.constant 0 : index
    %8 = vector.load %arg5[%c0_6, %c0_7, %c0_8] : memref<1x128x128xbf16, #tpu.memory_space<vmem>>, vector<1x128x128xbf16>
    %9 = vector.shape_cast %8 : vector<1x128x128xbf16> to vector<128x128xbf16>
    %cst = arith.constant dense<0.000000e+00> : vector<128x128xf32>
    %10 = tpu.matmul %7, %9, %cst {dimension_numbers = #tpu.dot_dimension_numbers<[1], [0], [0], [1], [0, 0, 1, 1], [], []>} : vector<128x128xbf16>, vector<128x128xbf16>, vector<128x128xf32> -> vector<128x128xf32>
    %11 = arith.addf %5, %10 : vector<128x128xf32>
    %c0_9 = arith.constant 0 : index
    %c0_10 = arith.constant 0 : index
    %12 = vector.load %arg8[%c0_9, %c0_10] : memref<128x128xf32, #tpu.memory_space<vmem>>, vector<128x128xf32>
    tpu.vector_store %arg8[%c0_9, %c0_10], %11 {strides = array<i32>} : memref<128x128xf32, #tpu.memory_space<vmem>>, vector<128x128xf32>,
    %c1_i32 = arith.constant 1 : i32
    %13 = arith.cmpi eq, %arg2, %c1_i32 : i32
    %c0_i32_11 = arith.constant 0 : i32
    %14 = arith.cmpi eq, %arg3, %c0_i32_11 : i32
    %15 = arith.andi %13, %14 : i1
    %16 = arith.extui %15 : i1 to i32
    %c0_i32_12 = arith.constant 0 : i32
    %17 = arith.cmpi ne, %16, %c0_i32_12 : i32
    scf.if %17 {
      %c0_13 = arith.constant 0 : index
      %c0_14 = arith.constant 0 : index
      %18 = vector.load %arg8[%c0_13, %c0_14] : memref<128x128xf32, #tpu.memory_space<vmem>>, vector<128x128xf32>
      %c0_15 = arith.constant 0 : index
      %c0_16 = arith.constant 0 : index
      %19 = vector.load %arg6[%c0_15, %c0_16] : memref<1x128xf32, #tpu.memory_space<vmem>>, vector<1x128xf32>
      %20 = vector.broadcast %19 : vector<1x128xf32> to vector<128x128xf32>
      %21 = arith.addf %18, %20 : vector<128x128xf32>
      %cst_17 = arith.constant 0.000000e+00 : f32
      %22 = vector.broadcast %cst_17 : f32 to vector<128x128xf32>
      %23 = arith.maximumf %21, %22 : vector<128x128xf32>
      %24 = arith.truncf %23 : vector<128x128xf32> to vector<128x128xbf16>
      %c0_18 = arith.constant 0 : index
      %c0_19 = arith.constant 0 : index
      %25 = vector.load %arg7[%c0_18, %c0_19] : memref<128x128xbf16, #tpu.memory_space<vmem>>, vector<128x128xbf16>
      tpu.vector_store %arg7[%c0_18, %c0_19], %24 {strides = array<i32>} : memref<128x128xbf16, #tpu.memory_space<vmem>>, vector<128x128xbf16>,
    } else {
    }
    return
  }
  func.func @transform_0(%arg0: i32, %arg1: i32, %arg2: i32, %arg3: i32) -> (i32, i32, i32) {
    %c0_i32 = arith.constant 0 : i32
    return %arg2, %arg0, %arg3 : i32, i32, i32
  }
  func.func @transform_1(%arg0: i32, %arg1: i32, %arg2: i32, %arg3: i32) -> (i32, i32, i32) {
    %c0_i32 = arith.constant 0 : i32
    return %arg2, %arg3, %arg1 : i32, i32, i32
  }
  func.func @transform_2(%arg0: i32, %arg1: i32, %arg2: i32, %arg3: i32) -> (i32, i32) {
    %c0_i32 = arith.constant 0 : i32
    %c0_i32_0 = arith.constant 0 : i32
    return %c0_i32, %arg1 : i32, i32
  }
  func.func @transform_3(%arg0: i32, %arg1: i32, %arg2: i32, %arg3: i32) -> (i32, i32) {
    %c0_i32 = arith.constant 0 : i32
    return %arg0, %arg1 : i32, i32
  }
}

</mosaic_0001>

<llo_original>
// kernel: tpu_custom_call.1
$region0: #{tpu_custom_call.1}
  #allocation0 [shape = 'u32[]', space=smem, size = 0x4, offset = 0x4, fixed_abs, tag = 'smem constant byte address 0x4 - core index']
  #allocation1 [shape = 'u32[144,128]{1,0:T(1,128)}', space=vmem, size = 0x12000, scoped, tag = 'internal scratch']
  #allocation2 [shape = 'f32[128,128]{1,0:T(8,128)}', space=vmem, size = 0x10000, scoped, tag = 'scratch operand']
  %s0 = inlined_call_operand.hbm [shape: bf16[2,128,128], index: 0, kind: input, shape index: {}]
  %s1 = inlined_call_operand.hbm [shape: bf16[2,128,128], index: 1, kind: input, shape index: {}]
  %s2 = inlined_call_operand.vmem [shape: f32[1,128], index: 2, kind: input, shape index: {}]
  %s3 = inlined_call_operand.hbm [shape: bf16[128,128], index: 3, kind: output, shape index: {}]
  %s4 = sld [smem:[#allocation0]]
  $region61: #{tpu_custom_call.1} parent=0
    _
  %s6 = ssub.s32 1, %s4
  %s7 = scalar_select 0, %s6, %s4
  $region1: #{tpu_custom_call.1} parent=0
    #allocation3 [shape = 'u8[65536]{0}', space=vmem, size = 0x10000, scoped, tag = 'input window, operand 0']
    #allocation4 [shape = 's32[2]{0}', space=sflag, size = 0x8, scoped, tag = 'scoped memory for tpu_custom_call.1']
    #allocation5 [shape = 's32[2]{0}', space=sflag, size = 0x8, scoped, tag = 'scoped memory for tpu_custom_call.1']
    #allocation6 [shape = 'u8[65536]{0}', space=vmem, size = 0x10000, scoped, tag = 'input window, operand 1']
    #allocation7 [shape = 's32[2]{0}', space=sflag, size = 0x8, scoped, tag = 'scoped memory for tpu_custom_call.1']
    #allocation8 [shape = 'u8[32768]{0}', space=vmem, size = 0x8000, scoped, tag = 'output window, operand 0, single buffered']
    %8 = vsyncpa [#allocation4], 0
    %s9 = scalar_lea.sflag [#allocation4], 1
    %10 = vsyncpa %s9, 0
    %11 = vsyncpa [#allocation7], 0
    %s12 = scalar_lea.sflag [#allocation7], 1
    %13 = vsyncpa %s12, 0
    %14 = vsyncpa [#allocation5], 0
    loop: start=0, step=1, limit=4
    $region2: #{tpu_custom_call.1} parent=1 // loop_pre_header
      _
    $region3: #{tpu_custom_call.1} parent=1 // loop_header
      %s16 = sphi 0, %s20
      %p17 = scmp.ge.s32.totalorder %s16, 4
      %s23 = sphi 0, %s49
      %s24 = sphi 0, %s45
      %s25 = sphi 0, %s41
      %s26 = sphi 0, %s37
      %s27 = sphi 0, %s23
      %s28 = sphi 0, %s24
      %s29 = sphi 0, %s25
      %s30 = sphi 0, %s26
      %s31 = sphi 0, %s27
      %s32 = sphi 0, %s28
      %s33 = sphi 0, %s29
      %s34 = sphi 0, %s30
      %s56 = sphi 0, %s58
      %s59 = sphi 0, %s56
      %s60 = sphi 0, %s59
      %s76 = sphi 0, %s60
      %s86 = sphi 0, %s88
      %s89 = sphi 0, %s86
      %s90 = sphi 0, %s89
      %s106 = sphi 0, %s90
      %s112 = sphi 0, %s114
      %s115 = sphi 0, %s112
      %s116 = sphi 0, %s115
      %s132 = sphi 0, %s116
      %s140 = sphi 0, %s142
      %s143 = sphi 0, %s140
      %s144 = sphi 0, %s143
      %s160 = sphi 0, %s144
    $region4: #{tpu_custom_call.1} parent=1 // loop_header_branch
      %19 = sbr.rel (%p17) target = $region8
    $region5: #{tpu_custom_call.1} parent=1 // loop_body
      %s21 = ssub.s32 %s16, 1
      %s22 = ssub.s32 %s16, 2
      %s35 = sadd.s32 1, %s26
      %p36 = scmp.ge.s32.totalorder %s35, 1
      %s37 = scalar_select %p36, 0, %s35
      %s38 = sadd.s32 1, %s25
      %s39 = scalar_select %p36, %s38, %s25
      %p40 = scmp.ge.s32.totalorder %s39, 2
      %s41 = scalar_select %p40, 0, %s39
      %s42 = sadd.s32 1, %s24
      %s43 = scalar_select %p40, %s42, %s24
      %p44 = scmp.ge.s32.totalorder %s43, 1
      %s45 = scalar_select %p44, 0, %s43
      %s46 = sadd.s32 1, %s23
      %s47 = scalar_select %p44, %s46, %s23
      %p48 = scmp.ge.s32.totalorder %s47, 1
      %s49 = scalar_select %p48, 0, %s47
      %s50 = ssub.s32 %s25, %s41
      %s51 = ssub.s32 %s23, %s49
      %s52 = sor.u32 %s50, %s51
      %s53 = ssub.s32 %s26, %s37
      %s54 = sor.u32 %s52, %s53
      %p55 = scmp.eq.s32.totalorder %s54, 0
      %s57 = sadd.s32 %s56, 1
      %s58 = scalar_select %p55, %s56, %s57
      %p61 = pneg %p55
      %p62 = scmp.eq.s32.totalorder %s16, 1
      %p63 = por %p61, %p62
      %p64 = scmp.ne.s32.totalorder %s56, %s59
      %p65 = scmp.eq.s32.totalorder %s16, 0
      %p66 = por %p64, %p65
      %p67 = scmp.ne.s32.totalorder %s56, %s59
      %p68 = scmp.eq.s32.totalorder %s21, 1
      %p69 = por %p67, %p68
      %p70 = scmp.ne.s32.totalorder %s59, %s60
      %p71 = scmp.eq.s32.totalorder %s21, 0
      %p72 = por %p70, %p71
      %p73 = scmp.ne.s32.totalorder %s59, %s60
      %p74 = scmp.eq.s32.totalorder %s22, 1
      %p75 = por %p73, %p74
      %p77 = scmp.ne.s32.totalorder %s60, %s76
      %p78 = scmp.eq.s32.totalorder %s22, 0
      %p79 = por %p77, %p78
      %s80 = ssub.s32 %s25, %s41
      %s81 = ssub.s32 %s26, %s37
      %s82 = sor.u32 %s80, %s81
      %s83 = ssub.s32 %s24, %s45
      %s84 = sor.u32 %s82, %s83
      %p85 = scmp.eq.s32.totalorder %s84, 0
      %s87 = sadd.s32 %s86, 1
      %s88 = scalar_select %p85, %s86, %s87
      %p91 = pneg %p85
      %p92 = scmp.eq.s32.totalorder %s16, 1
      %p93 = por %p91, %p92
      %p94 = scmp.ne.s32.totalorder %s86, %s89
      %p95 = scmp.eq.s32.totalorder %s16, 0
      %p96 = por %p94, %p95
      %p97 = scmp.ne.s32.totalorder %s86, %s89
      %p98 = scmp.eq.s32.totalorder %s21, 1
      %p99 = por %p97, %p98
      %p100 = scmp.ne.s32.totalorder %s89, %s90
      %p101 = scmp.eq.s32.totalorder %s21, 0
      %p102 = por %p100, %p101
      %p103 = scmp.ne.s32.totalorder %s89, %s90
      %p104 = scmp.eq.s32.totalorder %s22, 1
      %p105 = por %p103, %p104
      %p107 = scmp.ne.s32.totalorder %s90, %s106
      %p108 = scmp.eq.s32.totalorder %s22, 0
      %p109 = por %p107, %p108
      %s110 = ssub.s32 %s24, %s45
      %p111 = scmp.eq.s32.totalorder %s110, 0
      %s113 = sadd.s32 %s112, 1
      %s114 = scalar_select %p111, %s112, %s113
      %p117 = pneg %p111
      %p118 = scmp.eq.s32.totalorder %s16, 1
      %p119 = por %p117, %p118
      %p120 = scmp.ne.s32.totalorder %s112, %s115
      %p121 = scmp.eq.s32.totalorder %s16, 0
      %p122 = por %p120, %p121
      %p123 = scmp.ne.s32.totalorder %s112, %s115
      %p124 = scmp.eq.s32.totalorder %s21, 1
      %p125 = por %p123, %p124
      %p126 = scmp.ne.s32.totalorder %s115, %s116
      %p127 = scmp.eq.s32.totalorder %s21, 0
      %p128 = por %p126, %p127
      %p129 = scmp.ne.s32.totalorder %s115, %s116
      %p130 = scmp.eq.s32.totalorder %s22, 1
      %p131 = por %p129, %p130
      %p133 = scmp.ne.s32.totalorder %s116, %s132
      %p134 = scmp.eq.s32.totalorder %s22, 0
      %p135 = por %p133, %p134
      %s136 = ssub.s32 %s23, %s49
      %s137 = ssub.s32 %s24, %s45
      %s138 = sor.u32 %s136, %s137
      %p139 = scmp.eq.s32.totalorder %s138, 0
      %s141 = sadd.s32 %s140, 1
      %s142 = scalar_select %p139, %s140, %s141
      %p145 = pneg %p139
      %p146 = scmp.eq.s32.totalorder %s16, 1
      %p147 = por %p145, %p146
      %p148 = scmp.ne.s32.totalorder %s140, %s143
      %p149 = scmp.eq.s32.totalorder %s16, 0
      %p150 = por %p148, %p149
      %p151 = scmp.ne.s32.totalorder %s140, %s143
      %p152 = scmp.eq.s32.totalorder %s21, 1
      %p153 = por %p151, %p152
      %p154 = scmp.ne.s32.totalorder %s143, %s144
      %p155 = scmp.eq.s32.totalorder %s21, 0
      %p156 = por %p154, %p155
      %p157 = scmp.ne.s32.totalorder %s143, %s144
      %p158 = scmp.eq.s32.totalorder %s22, 1
      %p159 = por %p157, %p158
      %p161 = scmp.ne.s32.totalorder %s144, %s160
      %p162 = scmp.eq.s32.totalorder %s22, 0
      %p163 = por %p161, %p162
      %p164 = scmp.le.s32.totalorder 1, %s16
      %p165 = scmp.lt.s32.totalorder %s16, 3
      %p166 = pnand %p164, %p165
      %p167 = pneg %p166
      // Predicated region
      $region9: #{tpu_custom_call.1} parent=5 // pred_check
        _
      $region10: #{tpu_custom_call.1} parent=5 // pred_check_branch
        %169 = sbr.rel (%p166) target = $region12
      $region11: #{tpu_custom_call.1} parent=5 // pred_region
        %s170 = ssub.s32 %s16, 1
        // Predicated region
        $region13: #{tpu_custom_call.1} parent=11 // pred_check
          %p171 = pneg %p128
        $region14: #{tpu_custom_call.1} parent=11 // pred_check_branch
          %173 = sbr.rel (%p171) target = $region16
        $region15: #{tpu_custom_call.1} parent=11 // pred_region
          %p174 = scmp.lt.s32.totalorder %s28, 0
          %s175 = scalar_select %p174, %s28, 0
          %s176 = scalar_lea.vmem %s2, %s175
        $region16: #{tpu_custom_call.1} parent=11 // pred_fallthru
          _
      $region12: #{tpu_custom_call.1} parent=5 // pred_fallthru
        _
      %p177 = scmp.lt.s32.totalorder %s16, 2
      // Predicated region
      $region17: #{tpu_custom_call.1} parent=5 // pred_check
        %p178 = pneg %p177
      $region18: #{tpu_custom_call.1} parent=5 // pred_check_branch
        %180 = sbr.rel (%p178) target = $region20
      $region19: #{tpu_custom_call.1} parent=5 // pred_region
        // Predicated region
        $region21: #{tpu_custom_call.1} parent=19 // pred_check
          %p181 = pneg %p66
        $region22: #{tpu_custom_call.1} parent=19 // pred_check_branch
          %183 = sbr.rel (%p181) target = $region24
        $region23: #{tpu_custom_call.1} parent=19 // pred_region
          %s184 = sand.u32 %s56, 1
          %s185 = scalar_lea.sflag [#allocation4], %s184
          %s186 = sand.u32 %s56, 1
          %s187 = smul.addr %s186, 64
          %s188 = scalar_lea.vmem [#allocation3], %s187
          %s189 = smul.u32 16, %s23
          %s191 = ssub.s32 1024, 1024
          %192 = vsyncadd %s185, %s191
          %s193 = sadd.s32 %s26, %s189
          %s194 = smul.addr %s25, 16
          %s195 = sadd.s32 %s193, %s194
          %s196 = smul.addr %s195, 64
          %s197 = scalar_lea.hbm %s0, %s196
          %s198 = sshll.u32 %s188, 4
          %s199 = int_to_ptr.vmem [resolvable:$true] %s198
          %204 = dma.hbm_to_vmem [thread:$0]  %s197, 1024, %s199, %s185, 64, 64, 4
        $region24: #{tpu_custom_call.1} parent=19 // pred_fallthru
          _
        // Predicated region
        $region25: #{tpu_custom_call.1} parent=19 // pred_check
          %p205 = pneg %p96
        $region26: #{tpu_custom_call.1} parent=19 // pred_check_branch
          %207 = sbr.rel (%p205) target = $region28
        $region27: #{tpu_custom_call.1} parent=19 // pred_region
          %s208 = sand.u32 %s86, 1
          %s209 = scalar_lea.sflag [#allocation7], %s208
          %s210 = sand.u32 %s86, 1
          %s211 = smul.addr %s210, 64
          %s212 = scalar_lea.vmem [#allocation6], %s211
          %s213 = smul.u32 16, %s26
          %s215 = ssub.s32 1024, 1024
          %216 = vsyncadd %s209, %s215
          %s217 = sadd.s32 %s24, %s213
          %s218 = smul.addr %s25, 16
          %s219 = sadd.s32 %s217, %s218
          %s220 = smul.addr %s219, 64
          %s221 = scalar_lea.hbm %s1, %s220
          %s222 = sshll.u32 %s212, 4
          %s223 = int_to_ptr.vmem [resolvable:$true] %s222
          %228 = dma.hbm_to_vmem [thread:$0]  %s221, 1024, %s223, %s209, 64, 64, 4
        $region28: #{tpu_custom_call.1} parent=19 // pred_fallthru
          _
      $region20: #{tpu_custom_call.1} parent=5 // pred_fallthru
        _
      %p229 = scmp.le.s32.totalorder 1, %s16
      %p230 = scmp.lt.s32.totalorder %s16, 3
      %p231 = pnand %p229, %p230
      %p232 = pneg %p231
      // Predicated region
      $region29: #{tpu_custom_call.1} parent=5 // pred_check
        _
      $region30: #{tpu_custom_call.1} parent=5 // pred_check_branch
        %234 = sbr.rel (%p231) target = $region32
      $region31: #{tpu_custom_call.1} parent=5 // pred_region
        %s235 = ssub.s32 %s16, 1
        %s236 = sand.u32 %s59, 1
        %s237 = scalar_lea.sflag [#allocation4], %s236
        %s238 = sand.u32 %s59, 1
        %s239 = smul.addr %s238, 64
        %s240 = scalar_lea.vmem [#allocation3], %s239
        // Predicated region
        $region33: #{tpu_custom_call.1} parent=31 // pred_check
          %p241 = pneg %p72
        $region34: #{tpu_custom_call.1} parent=31 // pred_check_branch
          %243 = sbr.rel (%p241) target = $region36
        $region35: #{tpu_custom_call.1} parent=31 // pred_region
          %244 = dma.done %s237, 1024
        $region36: #{tpu_custom_call.1} parent=31 // pred_fallthru
          _
        %s245 = sand.u32 %s89, 1
        %s246 = scalar_lea.sflag [#allocation7], %s245
        %s247 = sand.u32 %s89, 1
        %s248 = smul.addr %s247, 64
        %s249 = scalar_lea.vmem [#allocation6], %s248
        // Predicated region
        $region37: #{tpu_custom_call.1} parent=31 // pred_check
          %p250 = pneg %p102
        $region38: #{tpu_custom_call.1} parent=31 // pred_check_branch
          %252 = sbr.rel (%p250) target = $region40
        $region39: #{tpu_custom_call.1} parent=31 // pred_region
          %253 = dma.done %s246, 1024
        $region40: #{tpu_custom_call.1} parent=31 // pred_fallthru
          _
        %s254 = sand.u32 %s59, 1
        %s255 = scalar_lea.sflag [#allocation4], %s254
        %s256 = sand.u32 %s59, 1
        %s257 = smul.addr %s256, 64
        %s258 = scalar_lea.vmem [#allocation3], %s257
        %p259 = pneg %p72
        %p260 = pneg %p69
        %s261 = sand.u32 %s89, 1
        %s262 = scalar_lea.sflag [#allocation7], %s261
        %s263 = sand.u32 %s89, 1
        %s264 = smul.addr %s263, 64
        %s265 = scalar_lea.vmem [#allocation6], %s264
        %p266 = pneg %p102
        %p267 = pneg %p99
        %p268 = scmp.lt.s32.totalorder %s28, 0
        %s269 = scalar_select %p268, %s28, 0
        %s270 = scalar_lea.vmem %s2, %s269
        %p271 = pneg %p128
        %p272 = pneg %p125
        %p273 = pneg %p156
        %p274 = pneg %p153
        %s275 = smul.u32 16, %s27
        %s276 = smul.u32 16, %s30
        %p277 = scmp.lt.s32.totalorder %s28, 0
        %s278 = scalar_select %p277, %s28, 0
        %s279 = scalar_lea.vmem %s2, %s278
        %s280 = smul.u32 16, %s27
        %p282 = scmp.eq.s32.totalorder %s29, 0
        %p283 = scmp.eq.s32.totalorder %s30, 0
        %p284 = pnand %p282, %p283
        %p285 = pneg %p284
        // Predicated region
        $region41: #{tpu_custom_call.1} parent=31 // pred_check
          _
        $region42: #{tpu_custom_call.1} parent=31 // pred_check_branch
          %287 = sbr.rel (%p284) target = $region44
        $region43: #{tpu_custom_call.1} parent=31 // pred_region
          %288 = vst [vmem:[#allocation2] sm:$0xff] 0.0
          %289 = vst [vmem:[#allocation2 + $0x8] sm:$0xff] 0.0
          %290 = vst [vmem:[#allocation2 + $0x10] sm:$0xff] 0.0
          %291 = vst [vmem:[#allocation2 + $0x18] sm:$0xff] 0.0
          %292 = vst [vmem:[#allocation2 + $0x20] sm:$0xff] 0.0
          %293 = vst [vmem:[#allocation2 + $0x28] sm:$0xff] 0.0
          %294 = vst [vmem:[#allocation2 + $0x30] sm:$0xff] 0.0
          %295 = vst [vmem:[#allocation2 + $0x38] sm:$0xff] 0.0
          %296 = vst [vmem:[#allocation2 + $0x40] sm:$0xff] 0.0
          %297 = vst [vmem:[#allocation2 + $0x48] sm:$0xff] 0.0
          %298 = vst [vmem:[#allocation2 + $0x50] sm:$0xff] 0.0
          %299 = vst [vmem:[#allocation2 + $0x58] sm:$0xff] 0.0
          %300 = vst [vmem:[#allocation2 + $0x60] sm:$0xff] 0.0
          %301 = vst [vmem:[#allocation2 + $0x68] sm:$0xff] 0.0
          %302 = vst [vmem:[#allocation2 + $0x70] sm:$0xff] 0.0
          %303 = vst [vmem:[#allocation2 + $0x78] sm:$0xff] 0.0
        $region44: #{tpu_custom_call.1} parent=31 // pred_fallthru
          _
        %v304 = vld [vmem:[#allocation2] sm:$0xff]
        %v305 = vld [vmem:[#allocation2 + $0x8] sm:$0xff]
        %v306 = vld [vmem:[#allocation2 + $0x10] sm:$0xff]
        %v307 = vld [vmem:[#allocation2 + $0x18] sm:$0xff]
        %v308 = vld [vmem:[#allocation2 + $0x20] sm:$0xff]
        %v309 = vld [vmem:[#allocation2 + $0x28] sm:$0xff]
        %v310 = vld [vmem:[#allocation2 + $0x30] sm:$0xff]
        %v311 = vld [vmem:[#allocation2 + $0x38] sm:$0xff]
        %v312 = vld [vmem:[#allocation2 + $0x40] sm:$0xff]
        %v313 = vld [vmem:[#allocation2 + $0x48] sm:$0xff]
        %v314 = vld [vmem:[#allocation2 + $0x50] sm:$0xff]
        %v315 = vld [vmem:[#allocation2 + $0x58] sm:$0xff]
        %v316 = vld [vmem:[#allocation2 + $0x60] sm:$0xff]
        %v317 = vld [vmem:[#allocation2 + $0x68] sm:$0xff]
        %v318 = vld [vmem:[#allocation2 + $0x70] sm:$0xff]
        %v319 = vld [vmem:[#allocation2 + $0x78] sm:$0xff]
        %v320 = vld [vmem:[%s240] sm:$0xf]
        %v321 = vld [vmem:[%s240 + $0x4] sm:$0xf]
        %v322 = vld [vmem:[%s240 + $0x8] sm:$0xf]
        %v323 = vld [vmem:[%s240 + $0xc] sm:$0xf]
        %v324 = vld [vmem:[%s240 + $0x10] sm:$0xf]
        %v325 = vld [vmem:[%s240 + $0x14] sm:$0xf]
        %v326 = vld [vmem:[%s240 + $0x18] sm:$0xf]
        %v327 = vld [vmem:[%s240 + $0x1c] sm:$0xf]
        %v328 = vld [vmem:[%s240 + $0x20] sm:$0xf]
        %v329 = vld [vmem:[%s240 + $0x24] sm:$0xf]
        %v330 = vld [vmem:[%s240 + $0x28] sm:$0xf]
        %v331 = vld [vmem:[%s240 + $0x2c] sm:$0xf]
        %v332 = vld [vmem:[%s240 + $0x30] sm:$0xf]
        %v333 = vld [vmem:[%s240 + $0x34] sm:$0xf]
        %v334 = vld [vmem:[%s240 + $0x38] sm:$0xf]
        %v335 = vld [vmem:[%s240 + $0x3c] sm:$0xf]
        %v336 = vld [vmem:[%s249] sm:$0xf]
        %v337 = vld [vmem:[%s249 + $0x4] sm:$0xf]
        %v338 = vld [vmem:[%s249 + $0x8] sm:$0xf]
        %v339 = vld [vmem:[%s249 + $0xc] sm:$0xf]
        %v340 = vld [vmem:[%s249 + $0x10] sm:$0xf]
        %v341 = vld [vmem:[%s249 + $0x14] sm:$0xf]
        %v342 = vld [vmem:[%s249 + $0x18] sm:$0xf]
        %v343 = vld [vmem:[%s249 + $0x1c] sm:$0xf]
        %v344 = vld [vmem:[%s249 + $0x20] sm:$0xf]
        %v345 = vld [vmem:[%s249 + $0x24] sm:$0xf]
        %v346 = vld [vmem:[%s249 + $0x28] sm:$0xf]
        %v347 = vld [vmem:[%s249 + $0x2c] sm:$0xf]
        %v348 = vld [vmem:[%s249 + $0x30] sm:$0xf]
        %v349 = vld [vmem:[%s249 + $0x34] sm:$0xf]
        %v350 = vld [vmem:[%s249 + $0x38] sm:$0xf]
        %v351 = vld [vmem:[%s249 + $0x3c] sm:$0xf]
        %v368 = vunpack.c.l.b16 %v320
        %v369 = vunpack.c.l.b16 %v321
        %v370 = vunpack.c.l.b16 %v322
        %v371 = vunpack.c.l.b16 %v323
        %v372 = vunpack.c.l.b16 %v324
        %v373 = vunpack.c.l.b16 %v325
        %v374 = vunpack.c.l.b16 %v326
        %v375 = vunpack.c.l.b16 %v327
        %v376 = vunpack.c.l.b16 %v328
        %v377 = vunpack.c.l.b16 %v329
        %v378 = vunpack.c.l.b16 %v330
        %v379 = vunpack.c.l.b16 %v331
        %v380 = vunpack.c.l.b16 %v332
        %v381 = vunpack.c.l.b16 %v333
        %v382 = vunpack.c.l.b16 %v334
        %v383 = vunpack.c.l.b16 %v335
        %v384 = vpack.c.b16 %v369, %v368
        %v385 = vpack.c.b16 %v371, %v370
        %v386 = vpack.c.b16 %v373, %v372
        %v387 = vpack.c.b16 %v375, %v374
        %v388 = vpack.c.b16 %v377, %v376
        %v389 = vpack.c.b16 %v379, %v378
        %v390 = vpack.c.b16 %v381, %v380
        %v391 = vpack.c.b16 %v383, %v382
        %v416 = vunpack.c.l.b16 %v336
        %v417 = vunpack.c.l.b16 %v337
        %v418 = vunpack.c.l.b16 %v338
        %v419 = vunpack.c.l.b16 %v339
        %v420 = vunpack.c.l.b16 %v340
        %v421 = vunpack.c.l.b16 %v341
        %v422 = vunpack.c.l.b16 %v342
        %v423 = vunpack.c.l.b16 %v343
        %v424 = vunpack.c.l.b16 %v344
        %v425 = vunpack.c.l.b16 %v345
        %v426 = vunpack.c.l.b16 %v346
        %v427 = vunpack.c.l.b16 %v347
        %v428 = vunpack.c.l.b16 %v348
        %v429 = vunpack.c.l.b16 %v349
        %v430 = vunpack.c.l.b16 %v350
        %v431 = vunpack.c.l.b16 %v351
        %v432 = vpack.c.b16 %v417, %v416
        %v433 = vpack.c.b16 %v419, %v418
        %v434 = vpack.c.b16 %v421, %v420
        %v435 = vpack.c.b16 %v423, %v422
        %v436 = vpack.c.b16 %v425, %v424
        %v437 = vpack.c.b16 %v427, %v426
        %v438 = vpack.c.b16 %v429, %v428
        %v439 = vpack.c.b16 %v431, %v430
        %448 = vmatprep.subr.bf16.mxu0 0
        %449 = vmatpush1.bf16.msra.mxu0 %v432
        %450 = vmatprep.subr.bf16.mxu0 0
        %451 = vmatpush1.bf16.msra.mxu0 %v433
        %452 = vmatprep.subr.bf16.mxu0 0
        %453 = vmatpush1.bf16.msra.mxu0 %v434
        %454 = vmatprep.subr.bf16.mxu0 0
        %455 = vmatpush1.bf16.msra.mxu0 %v435
        %456 = vmatprep.subr.bf16.mxu0 0
        %457 = vmatpush1.bf16.msra.mxu0 %v436
        %458 = vmatprep.subr.bf16.mxu0 0
        %459 = vmatpush1.bf16.msra.mxu0 %v437
        %460 = vmatprep.subr.bf16.mxu0 0
        %461 = vmatpush1.bf16.msra.mxu0 %v438
        %462 = vmatprep.subr.bf16.mxu0 0
        %463 = vmatpush1.bf16.msra.mxu0 %v439
        %464 = vmatprep.subr.bf16.mxu0 0
        %465 = vmatpush1.bf16.msra.mxu0 0
        %466 = vmatprep.subr.bf16.mxu0 0
        %467 = vmatpush1.bf16.msra.mxu0 0
        %468 = vmatprep.subr.bf16.mxu0 0
        %469 = vmatpush1.bf16.msra.mxu0 0
        %470 = vmatprep.subr.bf16.mxu0 0
        %471 = vmatpush1.bf16.msra.mxu0 0
        %472 = vmatprep.subr.bf16.mxu0 0
        %473 = vmatpush1.bf16.msra.mxu0 0
        %474 = vmatprep.subr.bf16.mxu0 0
        %475 = vmatpush1.bf16.msra.mxu0 0
        %476 = vmatprep.subr.bf16.mxu0 0
        %477 = vmatpush1.bf16.msra.mxu0 0
        %478 = vmatprep.subr.bf16.mxu0 0
        %479 = vmatpush1.bf16.msra.mxu0 0
        %480 = vmatprep.mubr.bf16.mxu0 0
        %481 = vmatmul.mubr.bf16.gmra.mrb[0].mxu0 %v384
        %v482 = vpop.f32.mrb[0].mxu0
        %v483 = vadd.f32 0.0, %v482
        %v484 = vpop.f32.mrb[0].mxu0
        %v485 = vpop.f32.mrb[0].mxu0
        %v486 = vadd.f32 0.0, %v485
        %v487 = vpop.f32.mrb[0].mxu0
        %488 = vmatprep.mubr.bf16.mxu0 0
        %489 = vmatmul.mubr.bf16.gmra.mrb[0].mxu0 %v385
        %v490 = vpop.f32.mrb[0].mxu0
        %v491 = vadd.f32 0.0, %v490
        %v492 = vpop.f32.mrb[0].mxu0
        %v493 = vpop.f32.mrb[0].mxu0
        %v494 = vadd.f32 0.0, %v493
        %v495 = vpop.f32.mrb[0].mxu0
        %496 = vmatprep.mubr.bf16.mxu0 0
        %497 = vmatmul.mubr.bf16.gmra.mrb[0].mxu0 %v386
        %v498 = vpop.f32.mrb[0].mxu0
        %v499 = vadd.f32 0.0, %v498
        %v500 = vpop.f32.mrb[0].mxu0
        %v501 = vpop.f32.mrb[0].mxu0
        %v502 = vadd.f32 0.0, %v501
        %v503 = vpop.f32.mrb[0].mxu0
        %504 = vmatprep.mubr.bf16.mxu0 0
        %505 = vmatmul.mubr.bf16.gmra.mrb[0].mxu0 %v387
        %v506 = vpop.f32.mrb[0].mxu0
        %v507 = vadd.f32 0.0, %v506
        %v508 = vpop.f32.mrb[0].mxu0
        %v509 = vpop.f32.mrb[0].mxu0
        %v510 = vadd.f32 0.0, %v509
        %v511 = vpop.f32.mrb[0].mxu0
        %512 = vmatprep.mubr.bf16.mxu0 0
        %513 = vmatmul.mubr.bf16.gmra.mrb[0].mxu0 %v388
        %v514 = vpop.f32.mrb[0].mxu0
        %v515 = vadd.f32 0.0, %v514
        %v516 = vpop.f32.mrb[0].mxu0
        %v517 = vpop.f32.mrb[0].mxu0
        %v518 = vadd.f32 0.0, %v517
        %v519 = vpop.f32.mrb[0].mxu0
        %520 = vmatprep.mubr.bf16.mxu0 0
        %521 = vmatmul.mubr.bf16.gmra.mrb[0].mxu0 %v389
        %v522 = vpop.f32.mrb[0].mxu0
        %v523 = vadd.f32 0.0, %v522
        %v524 = vpop.f32.mrb[0].mxu0
        %v525 = vpop.f32.mrb[0].mxu0
        %v526 = vadd.f32 0.0, %v525
        %v527 = vpop.f32.mrb[0].mxu0
        %528 = vmatprep.mubr.bf16.mxu0 0
        %529 = vmatmul.mubr.bf16.gmra.mrb[0].mxu0 %v390
        %v530 = vpop.f32.mrb[0].mxu0
        %v531 = vadd.f32 0.0, %v530
        %v532 = vpop.f32.mrb[0].mxu0
        %v533 = vpop.f32.mrb[0].mxu0
        %v534 = vadd.f32 0.0, %v533
        %v535 = vpop.f32.mrb[0].mxu0
        %536 = vmatprep.mubr.bf16.mxu0 0
        %537 = vmatmul.mubr.bf16.gmra.mrb[0].mxu0 %v391
        %v538 = vpop.f32.mrb[0].mxu0
        %v539 = vadd.f32 0.0, %v538
        %v540 = vpop.f32.mrb[0].mxu0
        %v541 = vpop.f32.mrb[0].mxu0
        %v542 = vadd.f32 0.0, %v541
        %v543 = vpop.f32.mrb[0].mxu0
        %544 = vdwg.mxu0
        %v545 = vadd.f32 %v304, %v483
        %v546 = vadd.f32 %v305, %v486
        %v547 = vadd.f32 %v306, %v491
        %v548 = vadd.f32 %v307, %v494
        %v549 = vadd.f32 %v308, %v499
        %v550 = vadd.f32 %v309, %v502
        %v551 = vadd.f32 %v310, %v507
        %v552 = vadd.f32 %v311, %v510
        %v553 = vadd.f32 %v312, %v515
        %v554 = vadd.f32 %v313, %v518
        %v555 = vadd.f32 %v314, %v523
        %v556 = vadd.f32 %v315, %v526
        %v557 = vadd.f32 %v316, %v531
        %v558 = vadd.f32 %v317, %v534
        %v559 = vadd.f32 %v318, %v539
        %v560 = vadd.f32 %v319, %v542
        %561 = vst [vmem:[#allocation2] sm:$0xff] %v545
        %562 = vst [vmem:[#allocation2 + $0x8] sm:$0xff] %v546
        %563 = vst [vmem:[#allocation2 + $0x10] sm:$0xff] %v547
        %564 = vst [vmem:[#allocation2 + $0x18] sm:$0xff] %v548
        %565 = vst [vmem:[#allocation2 + $0x20] sm:$0xff] %v549
        %566 = vst [vmem:[#allocation2 + $0x28] sm:$0xff] %v550
        %567 = vst [vmem:[#allocation2 + $0x30] sm:$0xff] %v551
        %568 = vst [vmem:[#allocation2 + $0x38] sm:$0xff] %v552
        %569 = vst [vmem:[#allocation2 + $0x40] sm:$0xff] %v553
        %570 = vst [vmem:[#allocation2 + $0x48] sm:$0xff] %v554
        %571 = vst [vmem:[#allocation2 + $0x50] sm:$0xff] %v555
        %572 = vst [vmem:[#allocation2 + $0x58] sm:$0xff] %v556
        %573 = vst [vmem:[#allocation2 + $0x60] sm:$0xff] %v557
        %574 = vst [vmem:[#allocation2 + $0x68] sm:$0xff] %v558
        %575 = vst [vmem:[#allocation2 + $0x70] sm:$0xff] %v559
        %576 = vst [vmem:[#allocation2 + $0x78] sm:$0xff] %v560
        %p577 = scmp.eq.s32.totalorder %s29, 1
        %p578 = pnand %p577, %p283
        %p579 = pneg %p578
        // Predicated region
        $region45: #{tpu_custom_call.1} parent=31 // pred_check
          _
        $region46: #{tpu_custom_call.1} parent=31 // pred_check_branch
          %581 = sbr.rel (%p578) target = $region48
        $region47: #{tpu_custom_call.1} parent=31 // pred_region
          %v582 = vld [vmem:[#allocation2] sm:$0xff]
          %v583 = vld [vmem:[#allocation2 + $0x8] sm:$0xff]
          %v584 = vld [vmem:[#allocation2 + $0x10] sm:$0xff]
          %v585 = vld [vmem:[#allocation2 + $0x18] sm:$0xff]
          %v586 = vld [vmem:[#allocation2 + $0x20] sm:$0xff]
          %v587 = vld [vmem:[#allocation2 + $0x28] sm:$0xff]
          %v588 = vld [vmem:[#allocation2 + $0x30] sm:$0xff]
          %v589 = vld [vmem:[#allocation2 + $0x38] sm:$0xff]
          %v590 = vld [vmem:[#allocation2 + $0x40] sm:$0xff]
          %v591 = vld [vmem:[#allocation2 + $0x48] sm:$0xff]
          %v592 = vld [vmem:[#allocation2 + $0x50] sm:$0xff]
          %v593 = vld [vmem:[#allocation2 + $0x58] sm:$0xff]
          %v594 = vld [vmem:[#allocation2 + $0x60] sm:$0xff]
          %v595 = vld [vmem:[#allocation2 + $0x68] sm:$0xff]
          %v596 = vld [vmem:[#allocation2 + $0x70] sm:$0xff]
          %v597 = vld [vmem:[#allocation2 + $0x78] sm:$0xff]
          %v598 = vld [vmem:[%s279] sm:$0x1]
          %v600 = vlaneseq
          %v601 = vshrl.u32 %v600, 7
          %v602 = vsub.s32 0, %v601
          %v603 = vrot.slane %v598, %v602
          %v605 = vadd.f32 %v582, %v603
          %v606 = vadd.f32 %v583, %v603
          %v607 = vadd.f32 %v584, %v603
          %v608 = vadd.f32 %v585, %v603
          %v609 = vadd.f32 %v586, %v603
          %v610 = vadd.f32 %v587, %v603
          %v611 = vadd.f32 %v588, %v603
          %v612 = vadd.f32 %v589, %v603
          %v613 = vadd.f32 %v590, %v603
          %v614 = vadd.f32 %v591, %v603
          %v615 = vadd.f32 %v592, %v603
          %v616 = vadd.f32 %v593, %v603
          %v617 = vadd.f32 %v594, %v603
          %v618 = vadd.f32 %v595, %v603
          %v619 = vadd.f32 %v596, %v603
          %v620 = vadd.f32 %v597, %v603
          %v621 = vmax.f32 %v605, 0.0
          %v622 = vmax.f32 %v606, 0.0
          %v623 = vmax.f32 %v607, 0.0
          %v624 = vmax.f32 %v608, 0.0
          %v625 = vmax.f32 %v609, 0.0
          %v626 = vmax.f32 %v610, 0.0
          %v627 = vmax.f32 %v611, 0.0
          %v628 = vmax.f32 %v612, 0.0
          %v629 = vmax.f32 %v613, 0.0
          %v630 = vmax.f32 %v614, 0.0
          %v631 = vmax.f32 %v615, 0.0
          %v632 = vmax.f32 %v616, 0.0
          %v633 = vmax.f32 %v617, 0.0
          %v634 = vmax.f32 %v618, 0.0
          %v635 = vmax.f32 %v619, 0.0
          %v636 = vmax.f32 %v620, 0.0
          %v637 = vpack.c.bf16 %v622, %v621
          %v638 = vpack.c.bf16 %v624, %v623
          %v639 = vpack.c.bf16 %v626, %v625
          %v640 = vpack.c.bf16 %v628, %v627
          %v641 = vpack.c.bf16 %v630, %v629
          %v642 = vpack.c.bf16 %v632, %v631
          %v643 = vpack.c.bf16 %v634, %v633
          %v644 = vpack.c.bf16 %v636, %v635
          %v653 = vunpack.c.l.b16 %v637
          %v654 = vunpack.c.h.b16 %v637
          %v655 = vunpack.c.l.b16 %v638
          %v656 = vunpack.c.h.b16 %v638
          %v657 = vunpack.c.l.b16 %v639
          %v658 = vunpack.c.h.b16 %v639
          %v659 = vunpack.c.l.b16 %v640
          %v660 = vunpack.c.h.b16 %v640
          %v661 = vunpack.c.l.b16 %v641
          %v662 = vunpack.c.h.b16 %v641
          %v663 = vunpack.c.l.b16 %v642
          %v664 = vunpack.c.h.b16 %v642
          %v665 = vunpack.c.l.b16 %v643
          %v666 = vunpack.c.h.b16 %v643
          %v667 = vunpack.c.l.b16 %v644
          %v668 = vunpack.c.h.b16 %v644
          %v669 = vpack.c.b16 %v653, %v653
          %v670 = vpack.c.b16 %v654, %v654
          %v671 = vpack.c.b16 %v655, %v655
          %v672 = vpack.c.b16 %v656, %v656
          %v673 = vpack.c.b16 %v657, %v657
          %v674 = vpack.c.b16 %v658, %v658
          %v675 = vpack.c.b16 %v659, %v659
          %v676 = vpack.c.b16 %v660, %v660
          %v677 = vpack.c.b16 %v661, %v661
          %v678 = vpack.c.b16 %v662, %v662
          %v679 = vpack.c.b16 %v663, %v663
          %v680 = vpack.c.b16 %v664, %v664
          %v681 = vpack.c.b16 %v665, %v665
          %v682 = vpack.c.b16 %v666, %v666
          %v683 = vpack.c.b16 %v667, %v667
          %v684 = vpack.c.b16 %v668, %v668
          %701 = vst [vmem:[#allocation8] sm:$0xf] %v669
          %702 = vst [vmem:[#allocation8 + $0x4] sm:$0xf] %v670
          %703 = vst [vmem:[#allocation8 + $0x8] sm:$0xf] %v671
          %704 = vst [vmem:[#allocation8 + $0xc] sm:$0xf] %v672
          %705 = vst [vmem:[#allocation8 + $0x10] sm:$0xf] %v673
          %706 = vst [vmem:[#allocation8 + $0x14] sm:$0xf] %v674
          %707 = vst [vmem:[#allocation8 + $0x18] sm:$0xf] %v675
          %708 = vst [vmem:[#allocation8 + $0x1c] sm:$0xf] %v676
          %709 = vst [vmem:[#allocation8 + $0x20] sm:$0xf] %v677
          %710 = vst [vmem:[#allocation8 + $0x24] sm:$0xf] %v678
          %711 = vst [vmem:[#allocation8 + $0x28] sm:$0xf] %v679
          %712 = vst [vmem:[#allocation8 + $0x2c] sm:$0xf] %v680
          %713 = vst [vmem:[#allocation8 + $0x30] sm:$0xf] %v681
          %714 = vst [vmem:[#allocation8 + $0x34] sm:$0xf] %v682
          %715 = vst [vmem:[#allocation8 + $0x38] sm:$0xf] %v683
          %716 = vst [vmem:[#allocation8 + $0x3c] sm:$0xf] %v684
        $region48: #{tpu_custom_call.1} parent=31 // pred_fallthru
          _
        // Predicated region
        $region49: #{tpu_custom_call.1} parent=31 // pred_check
          %p717 = pneg %p153
        $region50: #{tpu_custom_call.1} parent=31 // pred_check_branch
          %719 = sbr.rel (%p717) target = $region52
        $region51: #{tpu_custom_call.1} parent=31 // pred_region
          %s720 = smul.u32 16, %s27
          %s722 = ssub.s32 1024, 1024
          %723 = vsyncadd [#allocation5], %s722
          %s724 = sadd.s32 %s28, %s720
          %s725 = smul.addr %s724, 64
          %s726 = scalar_lea.hbm %s3, %s725
          %s727 = sshll.u32 [#allocation8], 4
          %s728 = int_to_ptr.vmem [resolvable:$true] %s727
          %733 = dma.vmem_to_hbm [thread:$0]  %s728, 1024, %s726, [#allocation5], 64, 64, 4
        $region52: #{tpu_custom_call.1} parent=31 // pred_fallthru
          _
        // Predicated region
        $region53: #{tpu_custom_call.1} parent=31 // pred_check
          %p734 = pneg %p153
        $region54: #{tpu_custom_call.1} parent=31 // pred_check_branch
          %736 = sbr.rel (%p734) target = $region56
        $region55: #{tpu_custom_call.1} parent=31 // pred_region
          %737 = dma.done [#allocation5], 1024
        $region56: #{tpu_custom_call.1} parent=31 // pred_fallthru
          _
      $region32: #{tpu_custom_call.1} parent=5 // pred_fallthru
        _
      %p738 = scmp.le.s32.totalorder 2, %s16
      // Predicated region
      $region57: #{tpu_custom_call.1} parent=5 // pred_check
        %p739 = pneg %p738
      $region58: #{tpu_custom_call.1} parent=5 // pred_check_branch
        %741 = sbr.rel (%p739) target = $region60
      $region59: #{tpu_custom_call.1} parent=5 // pred_region
        %s742 = ssub.s32 %s16, 2
      $region60: #{tpu_custom_call.1} parent=5 // pred_fallthru
        _
    $region6: #{tpu_custom_call.1} parent=1 // loop_footer
      %s20 = sadd.s32 1, %s16
    $region7: #{tpu_custom_call.1} parent=1 // loop_footer_branch
      %15 = sbr.rel target = $region3
    $region8: #{tpu_custom_call.1} parent=1 // loop_exit
      _
    %743 = vsyncpa [#allocation4], 1
    %s744 = scalar_lea.sflag [#allocation4], 1
    %745 = vsyncpa %s744, 1
    %746 = vsyncpa [#allocation7], 1
    %s747 = scalar_lea.sflag [#allocation7], 1
    %748 = vsyncpa %s747, 1
    %749 = vsyncpa [#allocation5], 1
    %s750 = scalar_lea.sflag [#allocation5], 1
    %751 = vsyncpa %s750, 1

</llo_original>
